<compile_context>
chip_gen: v7x
topology: tpu7x:2x2x1
jax: 0.10.0
libtpu: 0.0.40
codegen_flags: <defaults>
</compile_context>

<pallas_src>
import functools

import numpy as np
import jax
import jax.numpy as jnp
from jax import lax
from jax.experimental import pallas as pl
from jax.experimental.pallas import tpu as pltpu


# ----------------------------------------------------------------------------
# Static layer configuration
# ----------------------------------------------------------------------------
def _round_up(v, m):
    return ((v + m - 1) // m) * m


def ct_layer_specs(num_hiddens, compression_factor):
    """(Cin, Cout, K, stride, padding) for each ConvTranspose1d layer."""
    H = num_hiddens
    if compression_factor == 4:
        return ((H, H // 2, 4, 2, 1), (H // 2, 1, 4, 2, 1))
    if compression_factor == 8:
        return ((H, H, 4, 2, 1), (H, H // 2, 4, 2, 1), (H // 2, 1, 4, 2, 1))
    if compression_factor == 12:
        return ((H, H, 5, 3, 1), (H, H // 2, 4, 2, 1), (H // 2, 1, 4, 2, 1))
    if compression_factor == 16:
        return ((H, H, 4, 2, 1), (H, H, 4, 2, 1),
                (H, H // 2, 4, 2, 1), (H // 2, 1, 4, 2, 1))
    raise ValueError("compression_factor must be one of [4, 8, 12, 16]")


# ----------------------------------------------------------------------------
# Parameter init (PyTorch layouts, PyTorch-default-style uniform bounds)
# ----------------------------------------------------------------------------
def _conv1d_params(key, cin, cout, k, bias=True):
    kw, kb = jax.random.split(key)
    bound = 1.0 / float(cin * k) ** 0.5
    w = jax.random.uniform(kw, (cout, cin, k), jnp.float32, -bound, bound)
    b = jax.random.uniform(kb, (cout,), jnp.float32, -bound, bound) if bias else None
    return w, b


def _convtrans1d_params(key, cin, cout, k):
    kw, kb = jax.random.split(key)
    bound = 1.0 / float(cout * k) ** 0.5
    w = jax.random.uniform(kw, (cin, cout, k), jnp.float32, -bound, bound)
    b = jax.random.uniform(kb, (cout,), jnp.float32, -bound, bound)
    return w, b


def init_decoder_params(key, in_channels, num_hiddens, num_residual_layers,
                        num_residual_hiddens, compression_factor):
    keys = iter(jax.random.split(key, 64))
    H = num_hiddens
    params = {"conv1": _conv1d_params(next(keys), in_channels, H, 3, bias=True)}
    params["res"] = [
        (_conv1d_params(next(keys), H, num_residual_hiddens, 3, bias=False)[0],
         _conv1d_params(next(keys), num_residual_hiddens, H, 1, bias=False)[0])
        for _ in range(num_residual_layers)
    ]
    params["ct"] = [
        _convtrans1d_params(next(keys), cin, cout, k)
        for (cin, cout, k, _s, _p) in ct_layer_specs(H, compression_factor)
    ]
    return params


# ----------------------------------------------------------------------------
# One-time weight packing (kept entirely out of the forward path)
# ----------------------------------------------------------------------------
def pack_decoder_params(params, config):
    """Pack every layer for the folded / phase-major formulation.

    Each layer becomes:  y = W_packed @ concat([x(q-1); x(q); x(q+1)], 0) (+ b)
    where the rows of x are (input_phase, channel) pairs and the lane axis is
    the constant compressed length L (batch-folded).
    For a ConvTranspose1d layer (K, s, p) with n_in carried input phases the
    packed weight is block-structured:
        out row  = p_out * Cout + co      (n_out = s * n_in output phases)
        in  col  = ((delta+1) * n_in + p_in) * Cin + ci,  delta in {-1, 0, +1}
    with  k = p_out + p - s*(n_in*delta + p_in)  the original kernel tap.
    """
    in_channels, H, _n_res, _Hr, cf = config
    cin_pad = _round_up(in_channels, 8)

    # Conv1d(k=3, pad=1): tap-major (Cout, 3*Cin_pad) + bias column
    w1, b1 = params["conv1"]
    w1 = np.asarray(w1, np.float32)                       # (H, Cin, 3)
    w1p = np.zeros((H, cin_pad, 3), np.float32)
    w1p[:, :in_channels, :] = w1
    packed = [jnp.asarray(w1p.transpose(0, 2, 1).reshape(H, 3 * cin_pad)),
              jnp.asarray(np.asarray(b1, np.float32).reshape(-1, 1))]

    # Residual blocks: conv3 (bias-free) + conv1x1 (bias-free)
    for (rw1, rw2) in params["res"]:
        rw1 = np.asarray(rw1, np.float32)                 # (Hr, H, 3)
        rw2 = np.asarray(rw2, np.float32)                 # (H, Hr, 1)
        packed.append(jnp.asarray(rw1.transpose(0, 2, 1).reshape(rw1.shape[0], -1)))
        packed.append(jnp.asarray(rw2[:, :, 0]))

    # ConvTranspose chain: polyphase block weights, computed once here
    n_in = 1
    for (wt, bt), (cin, cout, K, s, p) in zip(params["ct"], ct_layer_specs(H, cf)):
        wt = np.asarray(wt, np.float32)                   # (cin, cout, K)
        bt = np.asarray(bt, np.float32)                   # (cout,)
        n_out = s * n_in
        Wb = np.zeros((n_out * cout, 3 * n_in * cin), np.float32)
        for p_out in range(n_out):
            for k in range(K):
                if (p_out + p - k) % s != 0:
                    continue
                j = (p_out + p - k) // s                  # virtual input offset
                delta, p_in = divmod(j, n_in)             # lane shift, input phase
                assert -1 <= delta <= 1, (K, s, p, n_in, p_out, k)
                col = ((delta + 1) * n_in + p_in) * cin
                Wb[p_out * cout:(p_out + 1) * cout, col:col + cin] = wt[:, :, k].T
        bb = np.tile(bt, n_out).reshape(-1, 1)            # bias per (p_out, co) row
        packed += [jnp.asarray(Wb), jnp.asarray(bb)]
        n_in = n_out
    return tuple(packed)


# ----------------------------------------------------------------------------
# Fused single-kernel decoder forward
# ----------------------------------------------------------------------------
@functools.partial(jax.jit, static_argnums=(2,))
def decoder_forward(packed_params, x, config):
    in_channels, H, n_res, _Hr, cf = config
    B, Cin, L = x.shape
    assert Cin == in_channels
    ct_specs = ct_layer_specs(H, cf)
    n_ct = len(ct_specs)
    n_w = len(packed_params)
    assert n_w == 2 + 2 * n_res + 2 * n_ct

    cin_pad = _round_up(in_channels, 8)
    BL = B * L

    def kernel(*refs):
        x_ref = refs[0]
        w_refs = refs[1:1 + n_w]
        out_ref = refs[1 + n_w]

        # 0/1 lane masks (built once): zero the column a +-1 lane shift pulls
        # across a batch-segment boundary == the conv "same" zero padding.
        lane_q = lax.broadcasted_iota(jnp.int32, (1, BL), 1) % L
        m_left = (lane_q != 0).astype(jnp.float32)          # valid lanes for x[q-1]
        m_right = (lane_q != (L - 1)).astype(jnp.float32)   # valid lanes for x[q+1]

        def im2col3(a):
            # rows = [x(q-1); x(q); x(q+1)]; shifts via XLU roll, halo via mask.
            left = pltpu.roll(a, shift=1, axis=1) * m_left
            right = pltpu.roll(a, shift=BL - 1, axis=1) * m_right
            return jnp.concatenate([left, a, right], axis=0)

        def conv3(a, w_ref, b_ref=None):
            y = jnp.dot(w_ref[...], im2col3(a), preferred_element_type=jnp.float32)
            if b_ref is not None:
                y = y + b_ref[...]
            return y

        wi = iter(w_refs)

        # Conv1d(k=3, pad=1)
        a = conv3(x_ref[...], next(wi), next(wi))

        # ResidualStack: x + Conv1x1(ReLU(Conv3(ReLU(x)))), both convs bias-free
        for _ in range(n_res):
            rw1, rw2 = next(wi), next(wi)
            t = jnp.maximum(a, 0.0)
            t = jnp.maximum(conv3(t, rw1), 0.0)
            a = a + jnp.dot(rw2[...], t, preferred_element_type=jnp.float32)

        # ConvTranspose chain: each layer is a 3-tap conv on the folded rows.
        # ReLU before every CT layer (= ResidualStack's final ReLU, then the
        # inter-CT ReLUs); no ReLU after the last one.
        for _ in range(n_ct):
            ct_w, ct_b = next(wi), next(wi)
            a = jnp.maximum(a, 0.0)
            a = conv3(a, ct_w, ct_b)

        out_ref[...] = a.astype(out_ref.dtype)              # (cf, B*L), one store

    # Fold batch into the lane axis: (B, Cin, L) -> (cin_pad, B*L)
    x2 = jnp.transpose(x, (1, 0, 2)).reshape(Cin, BL)
    if cin_pad > Cin:
        x2 = jnp.pad(x2, ((0, cin_pad - Cin), (0, 0)))

    vmem = pltpu.MemorySpace.VMEM
    out = pl.pallas_call(
        kernel,
        out_shape=jax.ShapeDtypeStruct((cf, BL), jnp.float32),
        in_specs=[pl.BlockSpec(memory_space=vmem)] * (1 + n_w),
        out_specs=pl.BlockSpec(memory_space=vmem),
        compiler_params=pltpu.CompilerParams(vmem_limit_bytes=32 * 1024 * 1024),
    )(x2, *packed_params)

    # Un-fold phases back to time order (wrapper-side layout plumbing):
    #   out[p, b*L + q] == y[b, cf*q + p]
    y = out.reshape(cf, B, L).transpose(1, 2, 0).reshape(B, L * cf)
    # torch.squeeze: drop all size-1 dims (drops batch if B == 1)
    return jnp.squeeze(y.astype(x.dtype))


# ----------------------------------------------------------------------------
# Pure-lax reference (PyTorch-layout params)
# ----------------------------------------------------------------------------
def decoder_forward_ref(params, x, config):
    _, H, _, _, cf = config
    dn = ("NCH", "OIH", "NCH")

    def conv(v, w, b, pad):
        y = lax.conv_general_dilated(v, w, (1,), [(pad, pad)], dimension_numbers=dn)
        return y if b is None else y + b.reshape(1, -1, 1)

    def convT(v, wt, b, k, s, p):
        w = jnp.transpose(jnp.flip(wt, axis=2), (1, 0, 2))
        y = lax.conv_general_dilated(v, w, (1,), [(k - 1 - p, k - 1 - p)],
                                     lhs_dilation=(s,), dimension_numbers=dn)
        return y + b.reshape(1, -1, 1)

    w, b = params["conv1"]
    v = conv(x, w, b, 1)
    for (w1, w2) in params["res"]:
        t = jax.nn.relu(conv(jax.nn.relu(v), w1, None, 1))
        v = v + conv(t, w2, None, 0)
    v = jax.nn.relu(v)
    specs = ct_layer_specs(H, cf)
    for i, ((wt, bt), (_ci, _co, k, s, p)) in enumerate(zip(params["ct"], specs)):
        v = convT(v, wt, bt, k, s, p)
        if i != len(specs) - 1:
            v = jax.nn.relu(v)
    return jnp.squeeze(v)


# ----------------------------------------------------------------------------
if __name__ == "__main__":
    key = jax.random.PRNGKey(0)
    in_channels, num_hiddens = 4, 32
    num_residual_layers, num_residual_hiddens = 2, 16
    B, L = 2, 16   # compressed sequence length fed to the decoder

    for cf in (4, 12, 16):   # stride-2/k=4 chains, the stride-3/k=5 path, deepest chain
        key, kp, kx = jax.random.split(key, 3)
        config = (in_channels, num_hiddens, num_residual_layers,
                  num_residual_hiddens, cf)
        params = init_decoder_params(kp, in_channels, num_hiddens,
                                     num_residual_layers, num_residual_hiddens, cf)
        packed = pack_decoder_params(params, config)   # layout transforms done once
        x = jax.random.normal(kx, (B, in_channels, L), jnp.float32)

        out = jax.block_until_ready(decoder_forward(packed, x, config))
        ref = decoder_forward_ref(params, x, config)

        assert out.shape == (B, L * cf), (cf, out.shape)
        assert jnp.allclose(out, ref, atol=1e-4, rtol=1e-4), (
            cf, float(jnp.abs(out - ref).max()))

    print("KERNEL_OK")
</pallas_src>

<mosaic_0001>
module attributes {stable_mosaic.version = 11 : i64} {
  func.func @kernel(%arg0: memref<8x32xf32, #tpu.memory_space<vmem>>, %arg1: memref<32x24xf32, #tpu.memory_space<vmem>>, %arg2: memref<32x1xf32, #tpu.memory_space<vmem>>, %arg3: memref<16x96xf32, #tpu.memory_space<vmem>>, %arg4: memref<32x16xf32, #tpu.memory_space<vmem>>, %arg5: memref<16x96xf32, #tpu.memory_space<vmem>>, %arg6: memref<32x16xf32, #tpu.memory_space<vmem>>, %arg7: memref<32x96xf32, #tpu.memory_space<vmem>>, %arg8: memref<32x1xf32, #tpu.memory_space<vmem>>, %arg9: memref<4x96xf32, #tpu.memory_space<vmem>>, %arg10: memref<4x1xf32, #tpu.memory_space<vmem>>, %arg11: memref<4x32xf32, #tpu.memory_space<vmem>>) attributes {dimension_semantics = [], scalar_prefetch = 0 : i64, scratch_operands = 0 : i64, tpu.core_type = #tpu.core_type<tc>} {
    %0 = tpu.iota {dimensions = array<i32: 1>} : vector<1x32xi32>
    %c16_i32 = arith.constant 16 : i32
    %c0_i32 = arith.constant 0 : i32
    %1 = arith.cmpi eq, %c16_i32, %c0_i32 : i32
    %c1_i32 = arith.constant 1 : i32
    %2 = arith.select %1, %c1_i32, %c16_i32 : i32
    %3 = vector.broadcast %2 : i32 to vector<1x32xi32>
    %4 = arith.remsi %0, %3 : vector<1x32xi32>
    %c0_i32_0 = arith.constant 0 : i32
    %5 = vector.broadcast %c0_i32_0 : i32 to vector<1x32xi32>
    %6 = arith.cmpi ne, %4, %5 : vector<1x32xi32>
    %c0_i32_1 = arith.constant 0 : i32
    %7 = vector.broadcast %c0_i32_1 : i32 to vector<1x32xi32>
    %8 = arith.cmpi slt, %4, %7 : vector<1x32xi32>
    %c0_i32_2 = arith.constant 0 : i32
    %9 = arith.cmpi slt, %2, %c0_i32_2 : i32
    %10 = vector.broadcast %9 : i1 to vector<1x32xi1>
    %11 = vector.broadcast %10 : vector<1x32xi1> to vector<1x32xi1>
    %12 = arith.xori %8, %11 : vector<1x32xi1>
    %13 = arith.andi %12, %6 : vector<1x32xi1>
    %14 = vector.broadcast %2 : i32 to vector<1x32xi32>
    %15 = arith.addi %4, %14 : vector<1x32xi32>
    %16 = arith.select %13, %15, %4 : vector<1x32xi1>, vector<1x32xi32>
    %c0_i32_3 = arith.constant 0 : i32
    %17 = vector.broadcast %c0_i32_3 : i32 to vector<1x32xi32>
    %18 = arith.cmpi ne, %16, %17 : vector<1x32xi32>
    %19 = arith.extui %18 : vector<1x32xi1> to vector<1x32xi32>
    %20 = arith.sitofp %19 : vector<1x32xi32> to vector<1x32xf32>
    %c15_i32 = arith.constant 15 : i32
    %21 = vector.broadcast %c15_i32 : i32 to vector<1x32xi32>
    %22 = arith.cmpi ne, %16, %21 : vector<1x32xi32>
    %23 = arith.extui %22 : vector<1x32xi1> to vector<1x32xi32>
    %24 = arith.sitofp %23 : vector<1x32xi32> to vector<1x32xf32>
    %c0 = arith.constant 0 : index
    %c0_4 = arith.constant 0 : index
    %25 = vector.load %arg0[%c0, %c0_4] : memref<8x32xf32, #tpu.memory_space<vmem>>, vector<8x32xf32>
    %c0_5 = arith.constant 0 : index
    %c0_6 = arith.constant 0 : index
    %26 = vector.load %arg1[%c0_5, %c0_6] : memref<32x24xf32, #tpu.memory_space<vmem>>, vector<32x24xf32>
    %c1_i32_7 = arith.constant 1 : i32
    %27 = tpu.dynamic_rotate %25 by %c1_i32_7 dim 1 : vector<8x32xf32>, i32 -> vector<8x32xf32>
    %28 = vector.broadcast %20 : vector<1x32xf32> to vector<8x32xf32>
    %29 = arith.mulf %27, %28 : vector<8x32xf32>
    %c31_i32 = arith.constant 31 : i32
    %30 = tpu.dynamic_rotate %25 by %c31_i32 dim 1 : vector<8x32xf32>, i32 -> vector<8x32xf32>
    %31 = vector.broadcast %24 : vector<1x32xf32> to vector<8x32xf32>
    %32 = arith.mulf %30, %31 : vector<8x32xf32>
    %33 = tpu.concatenate %29, %25, %32 in 0 : vector<8x32xf32>, vector<8x32xf32>, vector<8x32xf32> -> vector<24x32xf32>
    %cst = arith.constant dense<0.000000e+00> : vector<32x32xf32>
    %34 = tpu.matmul %26, %33, %cst {dimension_numbers = #tpu.dot_dimension_numbers<[1], [0], [0], [1], [0, 0, 1, 1], [], []>} : vector<32x24xf32>, vector<24x32xf32>, vector<32x32xf32> -> vector<32x32xf32>
    %c0_8 = arith.constant 0 : index
    %c0_9 = arith.constant 0 : index
    %35 = vector.load %arg2[%c0_8, %c0_9] : memref<32x1xf32, #tpu.memory_space<vmem>>, vector<32x1xf32>
    %36 = vector.broadcast %35 : vector<32x1xf32> to vector<32x32xf32>
    %37 = arith.addf %34, %36 : vector<32x32xf32>
    %cst_10 = arith.constant 0.000000e+00 : f32
    %38 = vector.broadcast %cst_10 : f32 to vector<32x32xf32>
    %39 = arith.maximumf %37, %38 : vector<32x32xf32>
    %c0_11 = arith.constant 0 : index
    %c0_12 = arith.constant 0 : index
    %40 = vector.load %arg3[%c0_11, %c0_12] : memref<16x96xf32, #tpu.memory_space<vmem>>, vector<16x96xf32>
    %c1_i32_13 = arith.constant 1 : i32
    %41 = tpu.dynamic_rotate %39 by %c1_i32_13 dim 1 : vector<32x32xf32>, i32 -> vector<32x32xf32>
    %42 = vector.broadcast %20 : vector<1x32xf32> to vector<32x32xf32>
    %43 = arith.mulf %41, %42 : vector<32x32xf32>
    %c31_i32_14 = arith.constant 31 : i32
    %44 = tpu.dynamic_rotate %39 by %c31_i32_14 dim 1 : vector<32x32xf32>, i32 -> vector<32x32xf32>
    %45 = vector.broadcast %24 : vector<1x32xf32> to vector<32x32xf32>
    %46 = arith.mulf %44, %45 : vector<32x32xf32>
    %47 = tpu.concatenate %43, %39, %46 in 0 : vector<32x32xf32>, vector<32x32xf32>, vector<32x32xf32> -> vector<96x32xf32>
    %cst_15 = arith.constant dense<0.000000e+00> : vector<16x32xf32>
    %48 = tpu.matmul %40, %47, %cst_15 {dimension_numbers = #tpu.dot_dimension_numbers<[1], [0], [0], [1], [0, 0, 1, 1], [], []>} : vector<16x96xf32>, vector<96x32xf32>, vector<16x32xf32> -> vector<16x32xf32>
    %cst_16 = arith.constant 0.000000e+00 : f32
    %49 = vector.broadcast %cst_16 : f32 to vector<16x32xf32>
    %50 = arith.maximumf %48, %49 : vector<16x32xf32>
    %c0_17 = arith.constant 0 : index
    %c0_18 = arith.constant 0 : index
    %51 = vector.load %arg4[%c0_17, %c0_18] : memref<32x16xf32, #tpu.memory_space<vmem>>, vector<32x16xf32>
    %cst_19 = arith.constant dense<0.000000e+00> : vector<32x32xf32>
    %52 = tpu.matmul %51, %50, %cst_19 {dimension_numbers = #tpu.dot_dimension_numbers<[1], [0], [0], [1], [0, 0, 1, 1], [], []>} : vector<32x16xf32>, vector<16x32xf32>, vector<32x32xf32> -> vector<32x32xf32>
    %53 = arith.addf %37, %52 : vector<32x32xf32>
    %cst_20 = arith.constant 0.000000e+00 : f32
    %54 = vector.broadcast %cst_20 : f32 to vector<32x32xf32>
    %55 = arith.maximumf %53, %54 : vector<32x32xf32>
    %c0_21 = arith.constant 0 : index
    %c0_22 = arith.constant 0 : index
    %56 = vector.load %arg5[%c0_21, %c0_22] : memref<16x96xf32, #tpu.memory_space<vmem>>, vector<16x96xf32>
    %c1_i32_23 = arith.constant 1 : i32
    %57 = tpu.dynamic_rotate %55 by %c1_i32_23 dim 1 : vector<32x32xf32>, i32 -> vector<32x32xf32>
    %58 = vector.broadcast %20 : vector<1x32xf32> to vector<32x32xf32>
    %59 = arith.mulf %57, %58 : vector<32x32xf32>
    %c31_i32_24 = arith.constant 31 : i32
    %60 = tpu.dynamic_rotate %55 by %c31_i32_24 dim 1 : vector<32x32xf32>, i32 -> vector<32x32xf32>
    %61 = vector.broadcast %24 : vector<1x32xf32> to vector<32x32xf32>
    %62 = arith.mulf %60, %61 : vector<32x32xf32>
    %63 = tpu.concatenate %59, %55, %62 in 0 : vector<32x32xf32>, vector<32x32xf32>, vector<32x32xf32> -> vector<96x32xf32>
    %cst_25 = arith.constant dense<0.000000e+00> : vector<16x32xf32>
    %64 = tpu.matmul %56, %63, %cst_25 {dimension_numbers = #tpu.dot_dimension_numbers<[1], [0], [0], [1], [0, 0, 1, 1], [], []>} : vector<16x96xf32>, vector<96x32xf32>, vector<16x32xf32> -> vector<16x32xf32>
    %cst_26 = arith.constant 0.000000e+00 : f32
    %65 = vector.broadcast %cst_26 : f32 to vector<16x32xf32>
    %66 = arith.maximumf %64, %65 : vector<16x32xf32>
    %c0_27 = arith.constant 0 : index
    %c0_28 = arith.constant 0 : index
    %67 = vector.load %arg6[%c0_27, %c0_28] : memref<32x16xf32, #tpu.memory_space<vmem>>, vector<32x16xf32>
    %cst_29 = arith.constant dense<0.000000e+00> : vector<32x32xf32>
    %68 = tpu.matmul %67, %66, %cst_29 {dimension_numbers = #tpu.dot_dimension_numbers<[1], [0], [0], [1], [0, 0, 1, 1], [], []>} : vector<32x16xf32>, vector<16x32xf32>, vector<32x32xf32> -> vector<32x32xf32>
    %69 = arith.addf %53, %68 : vector<32x32xf32>
    %cst_30 = arith.constant 0.000000e+00 : f32
    %70 = vector.broadcast %cst_30 : f32 to vector<32x32xf32>
    %71 = arith.maximumf %69, %70 : vector<32x32xf32>
    %c0_31 = arith.constant 0 : index
    %c0_32 = arith.constant 0 : index
    %72 = vector.load %arg7[%c0_31, %c0_32] : memref<32x96xf32, #tpu.memory_space<vmem>>, vector<32x96xf32>
    %c1_i32_33 = arith.constant 1 : i32
    %73 = tpu.dynamic_rotate %71 by %c1_i32_33 dim 1 : vector<32x32xf32>, i32 -> vector<32x32xf32>
    %74 = vector.broadcast %20 : vector<1x32xf32> to vector<32x32xf32>
    %75 = arith.mulf %73, %74 : vector<32x32xf32>
    %c31_i32_34 = arith.constant 31 : i32
    %76 = tpu.dynamic_rotate %71 by %c31_i32_34 dim 1 : vector<32x32xf32>, i32 -> vector<32x32xf32>
    %77 = vector.broadcast %24 : vector<1x32xf32> to vector<32x32xf32>
    %78 = arith.mulf %76, %77 : vector<32x32xf32>
    %79 = tpu.concatenate %75, %71, %78 in 0 : vector<32x32xf32>, vector<32x32xf32>, vector<32x32xf32> -> vector<96x32xf32>
    %cst_35 = arith.constant dense<0.000000e+00> : vector<32x32xf32>
    %80 = tpu.matmul %72, %79, %cst_35 {dimension_numbers = #tpu.dot_dimension_numbers<[1], [0], [0], [1], [0, 0, 1, 1], [], []>} : vector<32x96xf32>, vector<96x32xf32>, vector<32x32xf32> -> vector<32x32xf32>
    %c0_36 = arith.constant 0 : index
    %c0_37 = arith.constant 0 : index
    %81 = vector.load %arg8[%c0_36, %c0_37] : memref<32x1xf32, #tpu.memory_space<vmem>>, vector<32x1xf32>
    %82 = vector.broadcast %81 : vector<32x1xf32> to vector<32x32xf32>
    %83 = arith.addf %80, %82 : vector<32x32xf32>
    %cst_38 = arith.constant 0.000000e+00 : f32
    %84 = vector.broadcast %cst_38 : f32 to vector<32x32xf32>
    %85 = arith.maximumf %83, %84 : vector<32x32xf32>
    %c0_39 = arith.constant 0 : index
    %c0_40 = arith.constant 0 : index
    %86 = vector.load %arg9[%c0_39, %c0_40] : memref<4x96xf32, #tpu.memory_space<vmem>>, vector<4x96xf32>
    %c1_i32_41 = arith.constant 1 : i32
    %87 = tpu.dynamic_rotate %85 by %c1_i32_41 dim 1 : vector<32x32xf32>, i32 -> vector<32x32xf32>
    %88 = vector.broadcast %20 : vector<1x32xf32> to vector<32x32xf32>
    %89 = arith.mulf %87, %88 : vector<32x32xf32>
    %c31_i32_42 = arith.constant 31 : i32
    %90 = tpu.dynamic_rotate %85 by %c31_i32_42 dim 1 : vector<32x32xf32>, i32 -> vector<32x32xf32>
    %91 = vector.broadcast %24 : vector<1x32xf32> to vector<32x32xf32>
    %92 = arith.mulf %90, %91 : vector<32x32xf32>
    %93 = tpu.concatenate %89, %85, %92 in 0 : vector<32x32xf32>, vector<32x32xf32>, vector<32x32xf32> -> vector<96x32xf32>
    %cst_43 = arith.constant dense<0.000000e+00> : vector<4x32xf32>
    %94 = tpu.matmul %86, %93, %cst_43 {dimension_numbers = #tpu.dot_dimension_numbers<[1], [0], [0], [1], [0, 0, 1, 1], [], []>} : vector<4x96xf32>, vector<96x32xf32>, vector<4x32xf32> -> vector<4x32xf32>
    %c0_44 = arith.constant 0 : index
    %c0_45 = arith.constant 0 : index
    %95 = vector.load %arg10[%c0_44, %c0_45] : memref<4x1xf32, #tpu.memory_space<vmem>>, vector<4x1xf32>
    %96 = vector.broadcast %95 : vector<4x1xf32> to vector<4x32xf32>
    %97 = arith.addf %94, %96 : vector<4x32xf32>
    %c0_46 = arith.constant 0 : index
    %c0_47 = arith.constant 0 : index
    %98 = vector.load %arg11[%c0_46, %c0_47] : memref<4x32xf32, #tpu.memory_space<vmem>>, vector<4x32xf32>
    tpu.vector_store %arg11[%c0_46, %c0_47], %97 {strides = array<i32>} : memref<4x32xf32, #tpu.memory_space<vmem>>, vector<4x32xf32>,
    return
  }
}

</mosaic_0001>

<llo_original>
// kernel: decoder_forward.1
$region0: #{decoder_forward.1}
  #allocation0 [shape = 'u32[]', space=smem, size = 0x4, offset = 0x4, fixed_abs, tag = 'smem constant byte address 0x4 - core index']
  #allocation1 [shape = 'u32[144,128]{1,0:T(1,128)}', space=vmem, size = 0x12000, scoped, tag = 'internal scratch']
  %s0 = inlined_call_operand.vmem [shape: f32[8,32], index: 0, kind: input, shape index: {}]
  %s1 = inlined_call_operand.vmem [shape: f32[32,24], index: 1, kind: input, shape index: {}]
  %s2 = inlined_call_operand.vmem [shape: f32[32,1], index: 2, kind: input, shape index: {}]
  %s3 = inlined_call_operand.vmem [shape: f32[16,96], index: 3, kind: input, shape index: {}]
  %s4 = inlined_call_operand.vmem [shape: f32[32,16], index: 4, kind: input, shape index: {}]
  %s5 = inlined_call_operand.vmem [shape: f32[16,96], index: 5, kind: input, shape index: {}]
  %s6 = inlined_call_operand.vmem [shape: f32[32,16], index: 6, kind: input, shape index: {}]
  %s7 = inlined_call_operand.vmem [shape: f32[32,96], index: 7, kind: input, shape index: {}]
  %s8 = inlined_call_operand.vmem [shape: f32[32,1], index: 8, kind: input, shape index: {}]
  %s9 = inlined_call_operand.vmem [shape: f32[4,96], index: 9, kind: input, shape index: {}]
  %s10 = inlined_call_operand.vmem [shape: f32[4,1], index: 10, kind: input, shape index: {}]
  %s11 = inlined_call_operand.vmem [shape: f32[4,32], index: 11, kind: output, shape index: {}]
  %s12 = sld [smem:[#allocation0]]
  $region54: #{decoder_forward.1} parent=0
    _
  %s14 = ssub.s32 1, %s12
  %s15 = scalar_select 0, %s14, %s12
  // Predicated region
  $region2: #{decoder_forward.1} parent=0 // pred_check
    _
  $region3: #{decoder_forward.1} parent=0 // pred_check_branch
    %17 = sbr.rel (0) target = $region5
  $region4: #{decoder_forward.1} parent=0 // pred_region
    _
  $region5: #{decoder_forward.1} parent=0 // pred_fallthru
    _
  // Predicated region
  $region6: #{decoder_forward.1} parent=0 // pred_check
    _
  $region7: #{decoder_forward.1} parent=0 // pred_check_branch
    %19 = sbr.rel (0) target = $region9
  $region8: #{decoder_forward.1} parent=0 // pred_region
    _
  $region9: #{decoder_forward.1} parent=0 // pred_fallthru
    _
  // Predicated region
  $region10: #{decoder_forward.1} parent=0 // pred_check
    _
  $region11: #{decoder_forward.1} parent=0 // pred_check_branch
    %21 = sbr.rel (0) target = $region13
  $region12: #{decoder_forward.1} parent=0 // pred_region
    _
  $region13: #{decoder_forward.1} parent=0 // pred_fallthru
    _
  // Predicated region
  $region14: #{decoder_forward.1} parent=0 // pred_check
    _
  $region15: #{decoder_forward.1} parent=0 // pred_check_branch
    %23 = sbr.rel (0) target = $region17
  $region16: #{decoder_forward.1} parent=0 // pred_region
    _
  $region17: #{decoder_forward.1} parent=0 // pred_fallthru
    _
  // Predicated region
  $region18: #{decoder_forward.1} parent=0 // pred_check
    _
  $region19: #{decoder_forward.1} parent=0 // pred_check_branch
    %25 = sbr.rel (0) target = $region21
  $region20: #{decoder_forward.1} parent=0 // pred_region
    _
  $region21: #{decoder_forward.1} parent=0 // pred_fallthru
    _
  // Predicated region
  $region22: #{decoder_forward.1} parent=0 // pred_check
    _
  $region23: #{decoder_forward.1} parent=0 // pred_check_branch
    %27 = sbr.rel (0) target = $region25
  $region24: #{decoder_forward.1} parent=0 // pred_region
    _
  $region25: #{decoder_forward.1} parent=0 // pred_fallthru
    _
  // Predicated region
  $region26: #{decoder_forward.1} parent=0 // pred_check
    _
  $region27: #{decoder_forward.1} parent=0 // pred_check_branch
    %29 = sbr.rel (0) target = $region29
  $region28: #{decoder_forward.1} parent=0 // pred_region
    _
  $region29: #{decoder_forward.1} parent=0 // pred_fallthru
    _
  // Predicated region
  $region30: #{decoder_forward.1} parent=0 // pred_check
    _
  $region31: #{decoder_forward.1} parent=0 // pred_check_branch
    %31 = sbr.rel (0) target = $region33
  $region32: #{decoder_forward.1} parent=0 // pred_region
    _
  $region33: #{decoder_forward.1} parent=0 // pred_fallthru
    _
  // Predicated region
  $region34: #{decoder_forward.1} parent=0 // pred_check
    _
  $region35: #{decoder_forward.1} parent=0 // pred_check_branch
    %33 = sbr.rel (0) target = $region37
  $region36: #{decoder_forward.1} parent=0 // pred_region
    _
  $region37: #{decoder_forward.1} parent=0 // pred_fallthru
    _
  // Predicated region
  $region38: #{decoder_forward.1} parent=0 // pred_check
    _
  $region39: #{decoder_forward.1} parent=0 // pred_check_branch
    %35 = sbr.rel (0) target = $region41
  $region40: #{decoder_forward.1} parent=0 // pred_region
    _
  $region41: #{decoder_forward.1} parent=0 // pred_fallthru
    _
  // Predicated region
  $region42: #{decoder_forward.1} parent=0 // pred_check
    _
  $region43: #{decoder_forward.1} parent=0 // pred_check_branch
    %37 = sbr.rel (0) target = $region45
  $region44: #{decoder_forward.1} parent=0 // pred_region
    _
  $region45: #{decoder_forward.1} parent=0 // pred_fallthru
    _
  %v38 = vlaneseq
  %v39 = vand.u32 %v38, 127
  %vm40 = vcmp.lt.s32.totalorder %v39, 0
  %v41 = vsub.s32 0, %v39
  %v42 = vsel %vm40, %v41, %v39
  %v43 = vshrl.u32 %v42, 4
  %v44 = vand.u32 %v42, 15
  %v45 = vsub.s32 0, %v44
  %v46 = vsel %vm40, %v45, %v44
  %vm47 = vcmp.ne.s32.totalorder %v46, 0
  %vm48 = vcmp.lt.s32.totalorder %v46, 0
  %vm49 = vmand %vm48, %vm47
  %v50 = vadd.s32 %v46, 16
  %v51 = vsel %vm49, %v50, %v46
  %vm52 = vcmp.ne.s32.totalorder %v51, 0
  %v53 = vsel %vm52, 1, 0
  %v54 = vcvt.s32.f32 %v53
  %vm55 = vcmp.ne.s32.totalorder %v51, 15
  %v56 = vsel %vm55, 1, 0
  %v57 = vcvt.s32.f32 %v56
  %v58 = vld [vmem:[%s0] sm:$0xff]
  %v59 = vld [vmem:[%s1] sm:$0xff]
  %v60 = vld [vmem:[%s1 + $0x8] sm:$0xff]
  %v61 = vld [vmem:[%s1 + $0x10] sm:$0xff]
  %v62 = vld [vmem:[%s1 + $0x18] sm:$0xff]
  %vm63 = vcmask 1047808
  %64 = vrot.lane.b32.xlu0 %v58, 32
  %v65 = vpop.permute.xlu0 %64
  %v66 = vsel %vm63, %v65, %v58
  %67 = vrot.lane.b32.xlu0 %v66, 32
  %v68 = vpop.permute.xlu0 %67
  %v69 = vsel %vm63, %v68, %v58
  %71 = vrot.lane.b32.xlu0 %v54, 31
  %v72 = vpop.permute.xlu0 %71
  %v74 = vmul.f32 %v69, %v72
  %76 = vrot.lane.b32.xlu0 %v57, 1
  %v77 = vpop.permute.xlu0 %76
  %v79 = vmul.f32 %v69, %v77
  %81 = vrot.lane.b32.xlu0 %v58, 31
  %v82 = vpop.permute.xlu0 %81
  %84 = vrot.lane.b32.xlu0 %v79, 30
  %v85 = vpop.permute.xlu0 %84
  %v86 = vld [vmem:[%s2] sm:$0xff]
  %v87 = vld [vmem:[%s2 + $0x8] sm:$0xff]
  %v88 = vld [vmem:[%s2 + $0x10] sm:$0xff]
  %v89 = vld [vmem:[%s2 + $0x18] sm:$0xff]
  %91 = vset.pattern.permute.xlu0 0
  %92 = vperm.xlu0 %91, %v86
  %v93 = vpop.permute.xlu0 %92
  %96 = vset.pattern.permute.xlu0 0
  %97 = vperm.xlu0 %96, %v87
  %v98 = vpop.permute.xlu0 %97
  %101 = vset.pattern.permute.xlu0 0
  %102 = vperm.xlu0 %101, %v88
  %v103 = vpop.permute.xlu0 %102
  %106 = vset.pattern.permute.xlu0 0
  %107 = vperm.xlu0 %106, %v89
  %v108 = vpop.permute.xlu0 %107
  %111 = vrot.lane.b32.xlu0 %v74, 97
  %v112 = vpop.permute.xlu0 %111
  %113 = vrot.lane.b32.xlu0 %v82, 97
  %v114 = vpop.permute.xlu0 %113
  %115 = vrot.lane.b32.xlu0 %v85, 97
  %v116 = vpop.permute.xlu0 %115
  %vm120 = vcmask 195584
  %v122 = vsel %vm120, %v59, 0
  %v125 = vsel %vm120, %v60, 0
  %v128 = vsel %vm120, %v61, 0
  %v131 = vsel %vm120, %v62, 0
  %133 = vmatprep.subr.mxu0 0.0
  %134 = vmatpush1.msra.mxu0 %v112
  %135 = vmatprep.subr.mxu0 0.0
  %136 = vmatpush1.msra.mxu0 %v114
  %137 = vmatprep.subr.mxu0 0.0
  %138 = vmatpush1.msra.mxu0 %v116
  %139 = vmatprep.subr.mxu0 0.0
  %140 = vmatpush1.msra.mxu0 0.0
  %141 = vmatprep.subr.mxu0 0.0
  %142 = vmatpush1.msra.mxu0 0.0
  %143 = vmatprep.subr.mxu0 0.0
  %144 = vmatpush1.msra.mxu0 0.0
  %145 = vmatprep.subr.mxu0 0.0
  %146 = vmatpush1.msra.mxu0 0.0
  %147 = vmatprep.subr.mxu0 0.0
  %148 = vmatpush1.msra.mxu0 0.0
  %149 = vmatprep.subr.mxu0 0.0
  %150 = vmatpush1.msra.mxu0 0.0
  %151 = vmatprep.subr.mxu0 0.0
  %152 = vmatpush1.msra.mxu0 0.0
  %153 = vmatprep.subr.mxu0 0.0
  %154 = vmatpush1.msra.mxu0 0.0
  %155 = vmatprep.subr.mxu0 0.0
  %156 = vmatpush1.msra.mxu0 0.0
  %157 = vmatprep.subr.mxu0 0.0
  %158 = vmatpush1.msra.mxu0 0.0
  %159 = vmatprep.subr.mxu0 0.0
  %160 = vmatpush1.msra.mxu0 0.0
  %161 = vmatprep.subr.mxu0 0.0
  %162 = vmatpush1.msra.mxu0 0.0
  %163 = vmatprep.subr.mxu0 0.0
  %164 = vmatpush1.msra.mxu0 0.0
  %165 = vmatprep.subr.mxu0 0.0
  %166 = vmatpush1.msra.mxu0 0.0
  %167 = vmatprep.subr.mxu0 0.0
  %168 = vmatpush1.msra.mxu0 0.0
  %169 = vmatprep.subr.mxu0 0.0
  %170 = vmatpush1.msra.mxu0 0.0
  %171 = vmatprep.subr.mxu0 0.0
  %172 = vmatpush1.msra.mxu0 0.0
  %173 = vmatprep.subr.mxu0 0.0
  %174 = vmatpush1.msra.mxu0 0.0
  %175 = vmatprep.subr.mxu0 0.0
  %176 = vmatpush1.msra.mxu0 0.0
  %177 = vmatprep.subr.mxu0 0.0
  %178 = vmatpush1.msra.mxu0 0.0
  %179 = vmatprep.subr.mxu0 0.0
  %180 = vmatpush1.msra.mxu0 0.0
  %181 = vmatprep.subr.mxu0 0.0
  %182 = vmatpush1.msra.mxu0 0.0
  %183 = vmatprep.subr.mxu0 0.0
  %184 = vmatpush1.msra.mxu0 0.0
  %185 = vmatprep.subr.mxu0 0.0
  %186 = vmatpush1.msra.mxu0 0.0
  %187 = vmatprep.subr.mxu0 0.0
  %188 = vmatpush1.msra.mxu0 0.0
  %189 = vmatprep.subr.mxu0 0.0
  %190 = vmatpush1.msra.mxu0 0.0
  %191 = vmatprep.subr.mxu0 0.0
  %192 = vmatpush1.msra.mxu0 0.0
  %193 = vmatprep.subr.mxu0 0.0
  %194 = vmatpush1.msra.mxu0 0.0
  %195 = vmatprep.subr.mxu0 0.0
  %196 = vmatpush1.msra.mxu0 0.0
  %197 = vmatprep.mubr.f32.mxu0 0.0
  %198 = vmatmul.mubr.f32.gmra.mrb[0].mxu0 %v122
  %v199 = vpop.f32.mrb[0].mxu0
  %v200 = vadd.f32 %v93, %v199
  %v201 = vpop.f32.mrb[0].mxu0
  %202 = vmatprep.mubr.f32.mxu0 0.0
  %203 = vmatmul.mubr.f32.gmra.mrb[0].mxu0 %v125
  %v204 = vpop.f32.mrb[0].mxu0
  %v205 = vadd.f32 %v98, %v204
  %v206 = vpop.f32.mrb[0].mxu0
  %207 = vmatprep.mubr.f32.mxu0 0.0
  %208 = vmatmul.mubr.f32.gmra.mrb[0].mxu0 %v128
  %v209 = vpop.f32.mrb[0].mxu0
  %v210 = vadd.f32 %v103, %v209
  %v211 = vpop.f32.mrb[0].mxu0
  %212 = vmatprep.mubr.f32.mxu0 0.0
  %213 = vmatmul.mubr.f32.gmra.mrb[0].mxu0 %v131
  %v214 = vpop.f32.mrb[0].mxu0
  %v215 = vadd.f32 %v108, %v214
  %v216 = vpop.f32.mrb[0].mxu0
  %217 = vdwg.mxu0
  %v218 = vmax.f32 %v200, 0.0
  %v219 = vmax.f32 %v205, 0.0
  %v220 = vmax.f32 %v210, 0.0
  %v221 = vmax.f32 %v215, 0.0
  %v222 = vld [vmem:[%s3] sm:$0xff]
  %v223 = vld [vmem:[%s3 + $0x8] sm:$0xff]
  %224 = vrot.lane.b32.xlu0 %v218, 32
  %v225 = vpop.permute.xlu0 %224
  %v226 = vsel %vm63, %v225, %v218
  %227 = vrot.lane.b32.xlu0 %v219, 32
  %v228 = vpop.permute.xlu0 %227
  %v229 = vsel %vm63, %v228, %v219
  %230 = vrot.lane.b32.xlu0 %v220, 32
  %v231 = vpop.permute.xlu0 %230
  %v232 = vsel %vm63, %v231, %v220
  %233 = vrot.lane.b32.xlu0 %v221, 32
  %v234 = vpop.permute.xlu0 %233
  %v235 = vsel %vm63, %v234, %v221
  %236 = vrot.lane.b32.xlu0 %v226, 32
  %v237 = vpop.permute.xlu0 %236
  %238 = vrot.lane.b32.xlu0 %v229, 32
  %v239 = vpop.permute.xlu0 %238
  %240 = vrot.lane.b32.xlu0 %v232, 32
  %v241 = vpop.permute.xlu0 %240
  %242 = vrot.lane.b32.xlu0 %v235, 32
  %v243 = vpop.permute.xlu0 %242
  %v244 = vsel %vm63, %v237, %v218
  %v245 = vsel %vm63, %v239, %v219
  %v246 = vsel %vm63, %v241, %v220
  %v247 = vsel %vm63, %v243, %v221
  %v248 = vmul.f32 %v244, %v72
  %v249 = vmul.f32 %v245, %v72
  %v250 = vmul.f32 %v246, %v72
  %v251 = vmul.f32 %v247, %v72
  %v252 = vmul.f32 %v244, %v77
  %v253 = vmul.f32 %v245, %v77
  %v254 = vmul.f32 %v246, %v77
  %v255 = vmul.f32 %v247, %v77
  %260 = vrot.lane.b32.xlu0 %v218, 31
  %v261 = vpop.permute.xlu0 %260
  %262 = vrot.lane.b32.xlu0 %v219, 31
  %v263 = vpop.permute.xlu0 %262
  %264 = vrot.lane.b32.xlu0 %v220, 31
  %v265 = vpop.permute.xlu0 %264
  %266 = vrot.lane.b32.xlu0 %v221, 31
  %v267 = vpop.permute.xlu0 %266
  %272 = vrot.lane.b32.xlu0 %v252, 30
  %v273 = vpop.permute.xlu0 %272
  %274 = vrot.lane.b32.xlu0 %v253, 30
  %v275 = vpop.permute.xlu0 %274
  %276 = vrot.lane.b32.xlu0 %v254, 30
  %v277 = vpop.permute.xlu0 %276
  %278 = vrot.lane.b32.xlu0 %v255, 30
  %v279 = vpop.permute.xlu0 %278
  %284 = vrot.lane.b32.xlu0 %v248, 97
  %v285 = vpop.permute.xlu0 %284
  %286 = vrot.lane.b32.xlu0 %v249, 97
  %v287 = vpop.permute.xlu0 %286
  %288 = vrot.lane.b32.xlu0 %v250, 97
  %v289 = vpop.permute.xlu0 %288
  %290 = vrot.lane.b32.xlu0 %v251, 97
  %v291 = vpop.permute.xlu0 %290
  %292 = vrot.lane.b32.xlu0 %v261, 97
  %v293 = vpop.permute.xlu0 %292
  %294 = vrot.lane.b32.xlu0 %v263, 97
  %v295 = vpop.permute.xlu0 %294
  %296 = vrot.lane.b32.xlu0 %v265, 97
  %v297 = vpop.permute.xlu0 %296
  %298 = vrot.lane.b32.xlu0 %v267, 97
  %v299 = vpop.permute.xlu0 %298
  %300 = vrot.lane.b32.xlu0 %v273, 97
  %v301 = vpop.permute.xlu0 %300
  %302 = vrot.lane.b32.xlu0 %v275, 97
  %v303 = vpop.permute.xlu0 %302
  %304 = vrot.lane.b32.xlu0 %v277, 97
  %v305 = vpop.permute.xlu0 %304
  %306 = vrot.lane.b32.xlu0 %v279, 97
  %v307 = vpop.permute.xlu0 %306
  %vm320 = vcmask 785408
  %v322 = vsel %vm320, %v222, 0
  %v325 = vsel %vm320, %v223, 0
  %327 = vmatprep.subr.mxu0 0.0
  %328 = vmatpush1.msra.mxu0 %v285
  %329 = vmatprep.subr.mxu0 0.0
  %330 = vmatpush1.msra.mxu0 %v287
  %331 = vmatprep.subr.mxu0 0.0
  %332 = vmatpush1.msra.mxu0 %v289
  %333 = vmatprep.subr.mxu0 0.0
  %334 = vmatpush1.msra.mxu0 %v291
  %335 = vmatprep.subr.mxu0 0.0
  %336 = vmatpush1.msra.mxu0 %v293
  %337 = vmatprep.subr.mxu0 0.0
  %338 = vmatpush1.msra.mxu0 %v295
  %339 = vmatprep.subr.mxu0 0.0
  %340 = vmatpush1.msra.mxu0 %v297
  %341 = vmatprep.subr.mxu0 0.0
  %342 = vmatpush1.msra.mxu0 %v299
  %343 = vmatprep.subr.mxu0 0.0
  %344 = vmatpush1.msra.mxu0 %v301
  %345 = vmatprep.subr.mxu0 0.0
  %346 = vmatpush1.msra.mxu0 %v303
  %347 = vmatprep.subr.mxu0 0.0
  %348 = vmatpush1.msra.mxu0 %v305
  %349 = vmatprep.subr.mxu0 0.0
  %350 = vmatpush1.msra.mxu0 %v307
  %351 = vmatprep.subr.mxu0 0.0
  %352 = vmatpush1.msra.mxu0 0.0
  %353 = vmatprep.subr.mxu0 0.0
  %354 = vmatpush1.msra.mxu0 0.0
  %355 = vmatprep.subr.mxu0 0.0
  %356 = vmatpush1.msra.mxu0 0.0
  %357 = vmatprep.subr.mxu0 0.0
  %358 = vmatpush1.msra.mxu0 0.0
  %359 = vmatprep.subr.mxu0 0.0
  %360 = vmatpush1.msra.mxu0 0.0
  %361 = vmatprep.subr.mxu0 0.0
  %362 = vmatpush1.msra.mxu0 0.0
  %363 = vmatprep.subr.mxu0 0.0
  %364 = vmatpush1.msra.mxu0 0.0
  %365 = vmatprep.subr.mxu0 0.0
  %366 = vmatpush1.msra.mxu0 0.0
  %367 = vmatprep.subr.mxu0 0.0
  %368 = vmatpush1.msra.mxu0 0.0
  %369 = vmatprep.subr.mxu0 0.0
  %370 = vmatpush1.msra.mxu0 0.0
  %371 = vmatprep.subr.mxu0 0.0
  %372 = vmatpush1.msra.mxu0 0.0
  %373 = vmatprep.subr.mxu0 0.0
  %374 = vmatpush1.msra.mxu0 0.0
  %375 = vmatprep.subr.mxu0 0.0
  %376 = vmatpush1.msra.mxu0 0.0
  %377 = vmatprep.subr.mxu0 0.0
  %378 = vmatpush1.msra.mxu0 0.0
  %379 = vmatprep.subr.mxu0 0.0
  %380 = vmatpush1.msra.mxu0 0.0
  %381 = vmatprep.subr.mxu0 0.0
  %382 = vmatpush1.msra.mxu0 0.0
  %383 = vmatprep.subr.mxu0 0.0
  %384 = vmatpush1.msra.mxu0 0.0
  %385 = vmatprep.subr.mxu0 0.0
  %386 = vmatpush1.msra.mxu0 0.0
  %387 = vmatprep.subr.mxu0 0.0
  %388 = vmatpush1.msra.mxu0 0.0
  %389 = vmatprep.subr.mxu0 0.0
  %390 = vmatpush1.msra.mxu0 0.0
  %391 = vmatprep.mubr.f32.mxu0 0.0
  %392 = vmatmul.mubr.f32.gmra.mrb[0].mxu0 %v322
  %v393 = vpop.f32.mrb[0].mxu0
  %v394 = vadd.f32 0.0, %v393
  %v395 = vpop.f32.mrb[0].mxu0
  %396 = vmatprep.mubr.f32.mxu0 0.0
  %397 = vmatmul.mubr.f32.gmra.mrb[0].mxu0 %v325
  %v398 = vpop.f32.mrb[0].mxu0
  %v399 = vadd.f32 0.0, %v398
  %v400 = vpop.f32.mrb[0].mxu0
  %401 = vdwg.mxu0
  %v402 = vmax.f32 %v394, 0.0
  %v403 = vmax.f32 %v399, 0.0
  %v404 = vld [vmem:[%s4] sm:$0xff]
  %v405 = vld [vmem:[%s4 + $0x8] sm:$0xff]
  %v406 = vld [vmem:[%s4 + $0x10] sm:$0xff]
  %v407 = vld [vmem:[%s4 + $0x18] sm:$0xff]
  %vm408 = vcmask 130048
  %v410 = vsel %vm408, %v404, 0
  %v413 = vsel %vm408, %v405, 0
  %v416 = vsel %vm408, %v406, 0
  %v419 = vsel %vm408, %v407, 0
  %421 = vmatprep.subr.mxu0 0.0
  %422 = vmatpush1.msra.mxu0 %v402
  %423 = vmatprep.subr.mxu0 0.0
  %424 = vmatpush1.msra.mxu0 %v403
  %425 = vmatprep.subr.mxu0 0.0
  %426 = vmatpush1.msra.mxu0 0.0
  %427 = vmatprep.subr.mxu0 0.0
  %428 = vmatpush1.msra.mxu0 0.0
  %429 = vmatprep.subr.mxu0 0.0
  %430 = vmatpush1.msra.mxu0 0.0
  %431 = vmatprep.subr.mxu0 0.0
  %432 = vmatpush1.msra.mxu0 0.0
  %433 = vmatprep.subr.mxu0 0.0
  %434 = vmatpush1.msra.mxu0 0.0
  %435 = vmatprep.subr.mxu0 0.0
  %436 = vmatpush1.msra.mxu0 0.0
  %437 = vmatprep.subr.mxu0 0.0
  %438 = vmatpush1.msra.mxu0 0.0
  %439 = vmatprep.subr.mxu0 0.0
  %440 = vmatpush1.msra.mxu0 0.0
  %441 = vmatprep.subr.mxu0 0.0
  %442 = vmatpush1.msra.mxu0 0.0
  %443 = vmatprep.subr.mxu0 0.0
  %444 = vmatpush1.msra.mxu0 0.0
  %445 = vmatprep.subr.mxu0 0.0
  %446 = vmatpush1.msra.mxu0 0.0
  %447 = vmatprep.subr.mxu0 0.0
  %448 = vmatpush1.msra.mxu0 0.0
  %449 = vmatprep.subr.mxu0 0.0
  %450 = vmatpush1.msra.mxu0 0.0
  %451 = vmatprep.subr.mxu0 0.0
  %452 = vmatpush1.msra.mxu0 0.0
  %453 = vmatprep.subr.mxu0 0.0
  %454 = vmatpush1.msra.mxu0 0.0
  %455 = vmatprep.subr.mxu0 0.0
  %456 = vmatpush1.msra.mxu0 0.0
  %457 = vmatprep.subr.mxu0 0.0
  %458 = vmatpush1.msra.mxu0 0.0
  %459 = vmatprep.subr.mxu0 0.0
  %460 = vmatpush1.msra.mxu0 0.0
  %461 = vmatprep.subr.mxu0 0.0
  %462 = vmatpush1.msra.mxu0 0.0
  %463 = vmatprep.subr.mxu0 0.0
  %464 = vmatpush1.msra.mxu0 0.0
  %465 = vmatprep.subr.mxu0 0.0
  %466 = vmatpush1.msra.mxu0 0.0
  %467 = vmatprep.subr.mxu0 0.0
  %468 = vmatpush1.msra.mxu0 0.0
  %469 = vmatprep.subr.mxu0 0.0
  %470 = vmatpush1.msra.mxu0 0.0
  %471 = vmatprep.subr.mxu0 0.0
  %472 = vmatpush1.msra.mxu0 0.0
  %473 = vmatprep.subr.mxu0 0.0
  %474 = vmatpush1.msra.mxu0 0.0
  %475 = vmatprep.subr.mxu0 0.0
  %476 = vmatpush1.msra.mxu0 0.0
  %477 = vmatprep.subr.mxu0 0.0
  %478 = vmatpush1.msra.mxu0 0.0
  %479 = vmatprep.subr.mxu0 0.0
  %480 = vmatpush1.msra.mxu0 0.0
  %481 = vmatprep.subr.mxu0 0.0
  %482 = vmatpush1.msra.mxu0 0.0
  %483 = vmatprep.subr.mxu0 0.0
  %484 = vmatpush1.msra.mxu0 0.0
  %485 = vmatprep.mubr.f32.mxu0 0.0
  %486 = vmatmul.mubr.f32.gmra.mrb[0].mxu0 %v410
  %v487 = vpop.f32.mrb[0].mxu0
  %v488 = vadd.f32 0.0, %v487
  %v489 = vpop.f32.mrb[0].mxu0
  %490 = vmatprep.mubr.f32.mxu0 0.0
  %491 = vmatmul.mubr.f32.gmra.mrb[0].mxu0 %v413
  %v492 = vpop.f32.mrb[0].mxu0
  %v493 = vadd.f32 0.0, %v492
  %v494 = vpop.f32.mrb[0].mxu0
  %495 = vmatprep.mubr.f32.mxu0 0.0
  %496 = vmatmul.mubr.f32.gmra.mrb[0].mxu0 %v416
  %v497 = vpop.f32.mrb[0].mxu0
  %v498 = vadd.f32 0.0, %v497
  %v499 = vpop.f32.mrb[0].mxu0
  %500 = vmatprep.mubr.f32.mxu0 0.0
  %501 = vmatmul.mubr.f32.gmra.mrb[0].mxu0 %v419
  %v502 = vpop.f32.mrb[0].mxu0
  %v503 = vadd.f32 0.0, %v502
  %v504 = vpop.f32.mrb[0].mxu0
  %505 = vdwg.mxu0
  %v506 = vadd.f32 %v200, %v488
  %v507 = vadd.f32 %v205, %v493
  %v508 = vadd.f32 %v210, %v498
  %v509 = vadd.f32 %v215, %v503
  %v510 = vmax.f32 %v506, 0.0
  %v511 = vmax.f32 %v507, 0.0
  %v512 = vmax.f32 %v508, 0.0
  %v513 = vmax.f32 %v509, 0.0
  %v514 = vld [vmem:[%s5] sm:$0xff]
  %v515 = vld [vmem:[%s5 + $0x8] sm:$0xff]
  %516 = vrot.lane.b32.xlu0 %v510, 32
  %v517 = vpop.permute.xlu0 %516
  %v518 = vsel %vm63, %v517, %v510
  %519 = vrot.lane.b32.xlu0 %v511, 32
  %v520 = vpop.permute.xlu0 %519
  %v521 = vsel %vm63, %v520, %v511
  %522 = vrot.lane.b32.xlu0 %v512, 32
  %v523 = vpop.permute.xlu0 %522
  %v524 = vsel %vm63, %v523, %v512
  %525 = vrot.lane.b32.xlu0 %v513, 32
  %v526 = vpop.permute.xlu0 %525
  %v527 = vsel %vm63, %v526, %v513
  %528 = vrot.lane.b32.xlu0 %v518, 32
  %v529 = vpop.permute.xlu0 %528
  %530 = vrot.lane.b32.xlu0 %v521, 32
  %v531 = vpop.permute.xlu0 %530
  %532 = vrot.lane.b32.xlu0 %v524, 32
  %v533 = vpop.permute.xlu0 %532
  %534 = vrot.lane.b32.xlu0 %v527, 32
  %v535 = vpop.permute.xlu0 %534
  %v536 = vsel %vm63, %v529, %v510
  %v537 = vsel %vm63, %v531, %v511
  %v538 = vsel %vm63, %v533, %v512
  %v539 = vsel %vm63, %v535, %v513
  %v540 = vmul.f32 %v536, %v72
  %v541 = vmul.f32 %v537, %v72
  %v542 = vmul.f32 %v538, %v72
  %v543 = vmul.f32 %v539, %v72
  %v544 = vmul.f32 %v536, %v77
  %v545 = vmul.f32 %v537, %v77
  %v546 = vmul.f32 %v538, %v77
  %v547 = vmul.f32 %v539, %v77
  %552 = vrot.lane.b32.xlu0 %v510, 31
  %v553 = vpop.permute.xlu0 %552
  %554 = vrot.lane.b32.xlu0 %v511, 31
  %v555 = vpop.permute.xlu0 %554
  %556 = vrot.lane.b32.xlu0 %v512, 31
  %v557 = vpop.permute.xlu0 %556
  %558 = vrot.lane.b32.xlu0 %v513, 31
  %v559 = vpop.permute.xlu0 %558
  %564 = vrot.lane.b32.xlu0 %v544, 30
  %v565 = vpop.permute.xlu0 %564
  %566 = vrot.lane.b32.xlu0 %v545, 30
  %v567 = vpop.permute.xlu0 %566
  %568 = vrot.lane.b32.xlu0 %v546, 30
  %v569 = vpop.permute.xlu0 %568
  %570 = vrot.lane.b32.xlu0 %v547, 30
  %v571 = vpop.permute.xlu0 %570
  %576 = vrot.lane.b32.xlu0 %v540, 97
  %v577 = vpop.permute.xlu0 %576
  %578 = vrot.lane.b32.xlu0 %v541, 97
  %v579 = vpop.permute.xlu0 %578
  %580 = vrot.lane.b32.xlu0 %v542, 97
  %v581 = vpop.permute.xlu0 %580
  %582 = vrot.lane.b32.xlu0 %v543, 97
  %v583 = vpop.permute.xlu0 %582
  %584 = vrot.lane.b32.xlu0 %v553, 97
  %v585 = vpop.permute.xlu0 %584
  %586 = vrot.lane.b32.xlu0 %v555, 97
  %v587 = vpop.permute.xlu0 %586
  %588 = vrot.lane.b32.xlu0 %v557, 97
  %v589 = vpop.permute.xlu0 %588
  %590 = vrot.lane.b32.xlu0 %v559, 97
  %v591 = vpop.permute.xlu0 %590
  %592 = vrot.lane.b32.xlu0 %v565, 97
  %v593 = vpop.permute.xlu0 %592
  %594 = vrot.lane.b32.xlu0 %v567, 97
  %v595 = vpop.permute.xlu0 %594
  %596 = vrot.lane.b32.xlu0 %v569, 97
  %v597 = vpop.permute.xlu0 %596
  %598 = vrot.lane.b32.xlu0 %v571, 97
  %v599 = vpop.permute.xlu0 %598
  %v613 = vsel %vm320, %v514, 0
  %v616 = vsel %vm320, %v515, 0
  %618 = vmatprep.subr.mxu0 0.0
  %619 = vmatpush1.msra.mxu0 %v577
  %620 = vmatprep.subr.mxu0 0.0
  %621 = vmatpush1.msra.mxu0 %v579
  %622 = vmatprep.subr.mxu0 0.0
  %623 = vmatpush1.msra.mxu0 %v581
  %624 = vmatprep.subr.mxu0 0.0
  %625 = vmatpush1.msra.mxu0 %v583
  %626 = vmatprep.subr.mxu0 0.0
  %627 = vmatpush1.msra.mxu0 %v585
  %628 = vmatprep.subr.mxu0 0.0
  %629 = vmatpush1.msra.mxu0 %v587
  %630 = vmatprep.subr.mxu0 0.0
  %631 = vmatpush1.msra.mxu0 %v589
  %632 = vmatprep.subr.mxu0 0.0
  %633 = vmatpush1.msra.mxu0 %v591
  %634 = vmatprep.subr.mxu0 0.0
  %635 = vmatpush1.msra.mxu0 %v593
  %636 = vmatprep.subr.mxu0 0.0
  %637 = vmatpush1.msra.mxu0 %v595
  %638 = vmatprep.subr.mxu0 0.0
  %639 = vmatpush1.msra.mxu0 %v597
  %640 = vmatprep.subr.mxu0 0.0
  %641 = vmatpush1.msra.mxu0 %v599
  %642 = vmatprep.subr.mxu0 0.0
  %643 = vmatpush1.msra.mxu0 0.0
  %644 = vmatprep.subr.mxu0 0.0
  %645 = vmatpush1.msra.mxu0 0.0
  %646 = vmatprep.subr.mxu0 0.0
  %647 = vmatpush1.msra.mxu0 0.0
  %648 = vmatprep.subr.mxu0 0.0
  %649 = vmatpush1.msra.mxu0 0.0
  %650 = vmatprep.subr.mxu0 0.0
  %651 = vmatpush1.msra.mxu0 0.0
  %652 = vmatprep.subr.mxu0 0.0
  %653 = vmatpush1.msra.mxu0 0.0
  %654 = vmatprep.subr.mxu0 0.0
  %655 = vmatpush1.msra.mxu0 0.0
  %656 = vmatprep.subr.mxu0 0.0
  %657 = vmatpush1.msra.mxu0 0.0
  %658 = vmatprep.subr.mxu0 0.0
  %659 = vmatpush1.msra.mxu0 0.0
  %660 = vmatprep.subr.mxu0 0.0
  %661 = vmatpush1.msra.mxu0 0.0
  %662 = vmatprep.subr.mxu0 0.0
  %663 = vmatpush1.msra.mxu0 0.0
  %664 = vmatprep.subr.mxu0 0.0
  %665 = vmatpush1.msra.mxu0 0.0
  %666 = vmatprep.subr.mxu0 0.0
  %667 = vmatpush1.msra.mxu0 0.0
  %668 = vmatprep.subr.mxu0 0.0
  %669 = vmatpush1.msra.mxu0 0.0
  %670 = vmatprep.subr.mxu0 0.0
  %671 = vmatpush1.msra.mxu0 0.0
  %672 = vmatprep.subr.mxu0 0.0
  %673 = vmatpush1.msra.mxu0 0.0
  %674 = vmatprep.subr.mxu0 0.0
  %675 = vmatpush1.msra.mxu0 0.0
  %676 = vmatprep.subr.mxu0 0.0
  %677 = vmatpush1.msra.mxu0 0.0
  %678 = vmatprep.subr.mxu0 0.0
  %679 = vmatpush1.msra.mxu0 0.0
  %680 = vmatprep.subr.mxu0 0.0
  %681 = vmatpush1.msra.mxu0 0.0
  %682 = vmatprep.mubr.f32.mxu0 0.0
  %683 = vmatmul.mubr.f32.gmra.mrb[0].mxu0 %v613
  %v684 = vpop.f32.mrb[0].mxu0
  %v685 = vadd.f32 0.0, %v684
  %v686 = vpop.f32.mrb[0].mxu0
  %687 = vmatprep.mubr.f32.mxu0 0.0
  %688 = vmatmul.mubr.f32.gmra.mrb[0].mxu0 %v616
  %v689 = vpop.f32.mrb[0].mxu0
  %v690 = vadd.f32 0.0, %v689
  %v691 = vpop.f32.mrb[0].mxu0
  %692 = vdwg.mxu0
  %v693 = vmax.f32 %v685, 0.0
  %v694 = vmax.f32 %v690, 0.0
  %v695 = vld [vmem:[%s6] sm:$0xff]
  %v696 = vld [vmem:[%s6 + $0x8] sm:$0xff]
  %v697 = vld [vmem:[%s6 + $0x10] sm:$0xff]
  %v698 = vld [vmem:[%s6 + $0x18] sm:$0xff]
  %v700 = vsel %vm408, %v695, 0
  %v703 = vsel %vm408, %v696, 0
  %v706 = vsel %vm408, %v697, 0
  %v709 = vsel %vm408, %v698, 0
  %711 = vmatprep.subr.mxu0 0.0
  %712 = vmatpush1.msra.mxu0 %v693
  %713 = vmatprep.subr.mxu0 0.0
  %714 = vmatpush1.msra.mxu0 %v694
  %715 = vmatprep.subr.mxu0 0.0
  %716 = vmatpush1.msra.mxu0 0.0
  %717 = vmatprep.subr.mxu0 0.0
  %718 = vmatpush1.msra.mxu0 0.0
  %719 = vmatprep.subr.mxu0 0.0
  %720 = vmatpush1.msra.mxu0 0.0
  %721 = vmatprep.subr.mxu0 0.0
  %722 = vmatpush1.msra.mxu0 0.0
  %723 = vmatprep.subr.mxu0 0.0
  %724 = vmatpush1.msra.mxu0 0.0
  %725 = vmatprep.subr.mxu0 0.0
  %726 = vmatpush1.msra.mxu0 0.0
  %727 = vmatprep.subr.mxu0 0.0
  %728 = vmatpush1.msra.mxu0 0.0
  %729 = vmatprep.subr.mxu0 0.0
  %730 = vmatpush1.msra.mxu0 0.0
  %731 = vmatprep.subr.mxu0 0.0
  %732 = vmatpush1.msra.mxu0 0.0
  %733 = vmatprep.subr.mxu0 0.0
  %734 = vmatpush1.msra.mxu0 0.0
  %735 = vmatprep.subr.mxu0 0.0
  %736 = vmatpush1.msra.mxu0 0.0
  %737 = vmatprep.subr.mxu0 0.0
  %738 = vmatpush1.msra.mxu0 0.0
  %739 = vmatprep.subr.mxu0 0.0
  %740 = vmatpush1.msra.mxu0 0.0
  %741 = vmatprep.subr.mxu0 0.0
  %742 = vmatpush1.msra.mxu0 0.0
  %743 = vmatprep.subr.mxu0 0.0
  %744 = vmatpush1.msra.mxu0 0.0
  %745 = vmatprep.subr.mxu0 0.0
  %746 = vmatpush1.msra.mxu0 0.0
  %747 = vmatprep.subr.mxu0 0.0
  %748 = vmatpush1.msra.mxu0 0.0
  %749 = vmatprep.subr.mxu0 0.0
  %750 = vmatpush1.msra.mxu0 0.0
  %751 = vmatprep.subr.mxu0 0.0
  %752 = vmatpush1.msra.mxu0 0.0
  %753 = vmatprep.subr.mxu0 0.0
  %754 = vmatpush1.msra.mxu0 0.0
  %755 = vmatprep.subr.mxu0 0.0
  %756 = vmatpush1.msra.mxu0 0.0
  %757 = vmatprep.subr.mxu0 0.0
  %758 = vmatpush1.msra.mxu0 0.0
  %759 = vmatprep.subr.mxu0 0.0
  %760 = vmatpush1.msra.mxu0 0.0
  %761 = vmatprep.subr.mxu0 0.0
  %762 = vmatpush1.msra.mxu0 0.0
  %763 = vmatprep.subr.mxu0 0.0
  %764 = vmatpush1.msra.mxu0 0.0
  %765 = vmatprep.subr.mxu0 0.0
  %766 = vmatpush1.msra.mxu0 0.0
  %767 = vmatprep.subr.mxu0 0.0
  %768 = vmatpush1.msra.mxu0 0.0
  %769 = vmatprep.subr.mxu0 0.0
  %770 = vmatpush1.msra.mxu0 0.0
  %771 = vmatprep.subr.mxu0 0.0
  %772 = vmatpush1.msra.mxu0 0.0
  %773 = vmatprep.subr.mxu0 0.0
  %774 = vmatpush1.msra.mxu0 0.0
  %775 = vmatprep.mubr.f32.mxu0 0.0
  %776 = vmatmul.mubr.f32.gmra.mrb[0].mxu0 %v700
  %v777 = vpop.f32.mrb[0].mxu0
  %v778 = vadd.f32 0.0, %v777
  %v779 = vpop.f32.mrb[0].mxu0
  %780 = vmatprep.mubr.f32.mxu0 0.0
  %781 = vmatmul.mubr.f32.gmra.mrb[0].mxu0 %v703
  %v782 = vpop.f32.mrb[0].mxu0
  %v783 = vadd.f32 0.0, %v782
  %v784 = vpop.f32.mrb[0].mxu0
  %785 = vmatprep.mubr.f32.mxu0 0.0
  %786 = vmatmul.mubr.f32.gmra.mrb[0].mxu0 %v706
  %v787 = vpop.f32.mrb[0].mxu0
  %v788 = vadd.f32 0.0, %v787
  %v789 = vpop.f32.mrb[0].mxu0
  %790 = vmatprep.mubr.f32.mxu0 0.0
  %791 = vmatmul.mubr.f32.gmra.mrb[0].mxu0 %v709
  %v792 = vpop.f32.mrb[0].mxu0
  %v793 = vadd.f32 0.0, %v792
  %v794 = vpop.f32.mrb[0].mxu0
  %795 = vdwg.mxu0
  %v796 = vadd.f32 %v506, %v778
  %v797 = vadd.f32 %v507, %v783
  %v798 = vadd.f32 %v508, %v788
  %v799 = vadd.f32 %v509, %v793
  %v800 = vmax.f32 %v796, 0.0
  %v801 = vmax.f32 %v797, 0.0
  %v802 = vmax.f32 %v798, 0.0
  %v803 = vmax.f32 %v799, 0.0
  %v804 = vld [vmem:[%s7] sm:$0xff]
  %v805 = vld [vmem:[%s7 + $0x8] sm:$0xff]
  %v806 = vld [vmem:[%s7 + $0x10] sm:$0xff]
  %v807 = vld [vmem:[%s7 + $0x18] sm:$0xff]
  %808 = vrot.lane.b32.xlu0 %v800, 32
  %v809 = vpop.permute.xlu0 %808
  %v810 = vsel %vm63, %v809, %v800
  %811 = vrot.lane.b32.xlu0 %v801, 32
  %v812 = vpop.permute.xlu0 %811
  %v813 = vsel %vm63, %v812, %v801
  %814 = vrot.lane.b32.xlu0 %v802, 32
  %v815 = vpop.permute.xlu0 %814
  %v816 = vsel %vm63, %v815, %v802
  %817 = vrot.lane.b32.xlu0 %v803, 32
  %v818 = vpop.permute.xlu0 %817
  %v819 = vsel %vm63, %v818, %v803
  %820 = vrot.lane.b32.xlu0 %v810, 32
  %v821 = vpop.permute.xlu0 %820
  %822 = vrot.lane.b32.xlu0 %v813, 32
  %v823 = vpop.permute.xlu0 %822
  %824 = vrot.lane.b32.xlu0 %v816, 32
  %v825 = vpop.permute.xlu0 %824
  %826 = vrot.lane.b32.xlu0 %v819, 32
  %v827 = vpop.permute.xlu0 %826
  %v828 = vsel %vm63, %v821, %v800
  %v829 = vsel %vm63, %v823, %v801
  %v830 = vsel %vm63, %v825, %v802
  %v831 = vsel %vm63, %v827, %v803
  %v832 = vmul.f32 %v828, %v72
  %v833 = vmul.f32 %v829, %v72
  %v834 = vmul.f32 %v830, %v72
  %v835 = vmul.f32 %v831, %v72
  %v836 = vmul.f32 %v828, %v77
  %v837 = vmul.f32 %v829, %v77
  %v838 = vmul.f32 %v830, %v77
  %v839 = vmul.f32 %v831, %v77
  %844 = vrot.lane.b32.xlu0 %v800, 31
  %v845 = vpop.permute.xlu0 %844
  %846 = vrot.lane.b32.xlu0 %v801, 31
  %v847 = vpop.permute.xlu0 %846
  %848 = vrot.lane.b32.xlu0 %v802, 31
  %v849 = vpop.permute.xlu0 %848
  %850 = vrot.lane.b32.xlu0 %v803, 31
  %v851 = vpop.permute.xlu0 %850
  %856 = vrot.lane.b32.xlu0 %v836, 30
  %v857 = vpop.permute.xlu0 %856
  %858 = vrot.lane.b32.xlu0 %v837, 30
  %v859 = vpop.permute.xlu0 %858
  %860 = vrot.lane.b32.xlu0 %v838, 30
  %v861 = vpop.permute.xlu0 %860
  %862 = vrot.lane.b32.xlu0 %v839, 30
  %v863 = vpop.permute.xlu0 %862
  %v864 = vld [vmem:[%s8] sm:$0xff]
  %v865 = vld [vmem:[%s8 + $0x8] sm:$0xff]
  %v866 = vld [vmem:[%s8 + $0x10] sm:$0xff]
  %v867 = vld [vmem:[%s8 + $0x18] sm:$0xff]
  %869 = vset.pattern.permute.xlu0 0
  %870 = vperm.xlu0 %869, %v864
  %v871 = vpop.permute.xlu0 %870
  %874 = vset.pattern.permute.xlu0 0
  %875 = vperm.xlu0 %874, %v865
  %v876 = vpop.permute.xlu0 %875
  %879 = vset.pattern.permute.xlu0 0
  %880 = vperm.xlu0 %879, %v866
  %v881 = vpop.permute.xlu0 %880
  %884 = vset.pattern.permute.xlu0 0
  %885 = vperm.xlu0 %884, %v867
  %v886 = vpop.permute.xlu0 %885
  %892 = vrot.lane.b32.xlu0 %v832, 97
  %v893 = vpop.permute.xlu0 %892
  %894 = vrot.lane.b32.xlu0 %v833, 97
  %v895 = vpop.permute.xlu0 %894
  %896 = vrot.lane.b32.xlu0 %v834, 97
  %v897 = vpop.permute.xlu0 %896
  %898 = vrot.lane.b32.xlu0 %v835, 97
  %v899 = vpop.permute.xlu0 %898
  %900 = vrot.lane.b32.xlu0 %v845, 97
  %v901 = vpop.permute.xlu0 %900
  %902 = vrot.lane.b32.xlu0 %v847, 97
  %v903 = vpop.permute.xlu0 %902
  %904 = vrot.lane.b32.xlu0 %v849, 97
  %v905 = vpop.permute.xlu0 %904
  %906 = vrot.lane.b32.xlu0 %v851, 97
  %v907 = vpop.permute.xlu0 %906
  %908 = vrot.lane.b32.xlu0 %v857, 97
  %v909 = vpop.permute.xlu0 %908
  %910 = vrot.lane.b32.xlu0 %v859, 97
  %v911 = vpop.permute.xlu0 %910
  %912 = vrot.lane.b32.xlu0 %v861, 97
  %v913 = vpop.permute.xlu0 %912
  %914 = vrot.lane.b32.xlu0 %v863, 97
  %v915 = vpop.permute.xlu0 %914
  %v929 = vsel %vm320, %v804, 0
  %v932 = vsel %vm320, %v805, 0
  %v935 = vsel %vm320, %v806, 0
  %v938 = vsel %vm320, %v807, 0
  %940 = vmatprep.subr.mxu0 0.0
  %941 = vmatpush1.msra.mxu0 %v893
  %942 = vmatprep.subr.mxu0 0.0
  %943 = vmatpush1.msra.mxu0 %v895
  %944 = vmatprep.subr.mxu0 0.0
  %945 = vmatpush1.msra.mxu0 %v897
  %946 = vmatprep.subr.mxu0 0.0
  %947 = vmatpush1.msra.mxu0 %v899
  %948 = vmatprep.subr.mxu0 0.0
  %949 = vmatpush1.msra.mxu0 %v901
  %950 = vmatprep.subr.mxu0 0.0
  %951 = vmatpush1.msra.mxu0 %v903
  %952 = vmatprep.subr.mxu0 0.0
  %953 = vmatpush1.msra.mxu0 %v905
  %954 = vmatprep.subr.mxu0 0.0
  %955 = vmatpush1.msra.mxu0 %v907
  %956 = vmatprep.subr.mxu0 0.0
  %957 = vmatpush1.msra.mxu0 %v909
  %958 = vmatprep.subr.mxu0 0.0
  %959 = vmatpush1.msra.mxu0 %v911
  %960 = vmatprep.subr.mxu0 0.0
  %961 = vmatpush1.msra.mxu0 %v913
  %962 = vmatprep.subr.mxu0 0.0
  %963 = vmatpush1.msra.mxu0 %v915
  %964 = vmatprep.subr.mxu0 0.0
  %965 = vmatpush1.msra.mxu0 0.0
  %966 = vmatprep.subr.mxu0 0.0
  %967 = vmatpush1.msra.mxu0 0.0
  %968 = vmatprep.subr.mxu0 0.0
  %969 = vmatpush1.msra.mxu0 0.0
  %970 = vmatprep.subr.mxu0 0.0
  %971 = vmatpush1.msra.mxu0 0.0
  %972 = vmatprep.subr.mxu0 0.0
  %973 = vmatpush1.msra.mxu0 0.0
  %974 = vmatprep.subr.mxu0 0.0
  %975 = vmatpush1.msra.mxu0 0.0
  %976 = vmatprep.subr.mxu0 0.0
  %977 = vmatpush1.msra.mxu0 0.0
  %978 = vmatprep.subr.mxu0 0.0
  %979 = vmatpush1.msra.mxu0 0.0
  %980 = vmatprep.subr.mxu0 0.0
  %981 = vmatpush1.msra.mxu0 0.0
  %982 = vmatprep.subr.mxu0 0.0
  %983 = vmatpush1.msra.mxu0 0.0
  %984 = vmatprep.subr.mxu0 0.0
  %985 = vmatpush1.msra.mxu0 0.0
  %986 = vmatprep.subr.mxu0 0.0
  %987 = vmatpush1.msra.mxu0 0.0
  %988 = vmatprep.subr.mxu0 0.0
  %989 = vmatpush1.msra.mxu0 0.0
  %990 = vmatprep.subr.mxu0 0.0
  %991 = vmatpush1.msra.mxu0 0.0
  %992 = vmatprep.subr.mxu0 0.0
  %993 = vmatpush1.msra.mxu0 0.0
  %994 = vmatprep.subr.mxu0 0.0
  %995 = vmatpush1.msra.mxu0 0.0
  %996 = vmatprep.subr.mxu0 0.0
  %997 = vmatpush1.msra.mxu0 0.0
  %998 = vmatprep.subr.mxu0 0.0
  %999 = vmatpush1.msra.mxu0 0.0
  %1000 = vmatprep.subr.mxu0 0.0
  %1001 = vmatpush1.msra.mxu0 0.0
  %1002 = vmatprep.subr.mxu0 0.0
  %1003 = vmatpush1.msra.mxu0 0.0
  %1004 = vmatprep.mubr.f32.mxu0 0.0
  %1005 = vmatmul.mubr.f32.gmra.mrb[0].mxu0 %v929
  %v1006 = vpop.f32.mrb[0].mxu0
  %v1007 = vadd.f32 %v871, %v1006
  %v1008 = vpop.f32.mrb[0].mxu0
  %1009 = vmatprep.mubr.f32.mxu0 0.0
  %1010 = vmatmul.mubr.f32.gmra.mrb[0].mxu0 %v932
  %v1011 = vpop.f32.mrb[0].mxu0
  %v1012 = vadd.f32 %v876, %v1011
  %v1013 = vpop.f32.mrb[0].mxu0
  %1014 = vmatprep.mubr.f32.mxu0 0.0
  %1015 = vmatmul.mubr.f32.gmra.mrb[0].mxu0 %v935
  %v1016 = vpop.f32.mrb[0].mxu0
  %v1017 = vadd.f32 %v881, %v1016
  %v1018 = vpop.f32.mrb[0].mxu0
  %1019 = vmatprep.mubr.f32.mxu0 0.0
  %1020 = vmatmul.mubr.f32.gmra.mrb[0].mxu0 %v938
  %v1021 = vpop.f32.mrb[0].mxu0
  %v1022 = vadd.f32 %v886, %v1021
  %v1023 = vpop.f32.mrb[0].mxu0
  %1024 = vdwg.mxu0
  %v1025 = vmax.f32 %v1007, 0.0
  %v1026 = vmax.f32 %v1012, 0.0
  %v1027 = vmax.f32 %v1017, 0.0
  %v1028 = vmax.f32 %v1022, 0.0
  %v1029 = vld [vmem:[%s9] sm:$0xf]
  %1030 = vrot.lane.b32.xlu0 %v1025, 32
  %v1031 = vpop.permute.xlu0 %1030
  %v1032 = vsel %vm63, %v1031, %v1025
  %1033 = vrot.lane.b32.xlu0 %v1026, 32
  %v1034 = vpop.permute.xlu0 %1033
  %v1035 = vsel %vm63, %v1034, %v1026
  %1036 = vrot.lane.b32.xlu0 %v1027, 32
  %v1037 = vpop.permute.xlu0 %1036
  %v1038 = vsel %vm63, %v1037, %v1027
  %1039 = vrot.lane.b32.xlu0 %v1028, 32
  %v1040 = vpop.permute.xlu0 %1039
  %v1041 = vsel %vm63, %v1040, %v1028
  %1042 = vrot.lane.b32.xlu0 %v1032, 32
  %v1043 = vpop.permute.xlu0 %1042
  %1044 = vrot.lane.b32.xlu0 %v1035, 32
  %v1045 = vpop.permute.xlu0 %1044
  %1046 = vrot.lane.b32.xlu0 %v1038, 32
  %v1047 = vpop.permute.xlu0 %1046
  %1048 = vrot.lane.b32.xlu0 %v1041, 32
  %v1049 = vpop.permute.xlu0 %1048
  %v1050 = vsel %vm63, %v1043, %v1025
  %v1051 = vsel %vm63, %v1045, %v1026
  %v1052 = vsel %vm63, %v1047, %v1027
  %v1053 = vsel %vm63, %v1049, %v1028
  %v1054 = vmul.f32 %v1050, %v72
  %v1055 = vmul.f32 %v1051, %v72
  %v1056 = vmul.f32 %v1052, %v72
  %v1057 = vmul.f32 %v1053, %v72
  %v1058 = vmul.f32 %v1050, %v77
  %v1059 = vmul.f32 %v1051, %v77
  %v1060 = vmul.f32 %v1052, %v77
  %v1061 = vmul.f32 %v1053, %v77
  %1066 = vrot.lane.b32.xlu0 %v1025, 31
  %v1067 = vpop.permute.xlu0 %1066
  %1068 = vrot.lane.b32.xlu0 %v1026, 31
  %v1069 = vpop.permute.xlu0 %1068
  %1070 = vrot.lane.b32.xlu0 %v1027, 31
  %v1071 = vpop.permute.xlu0 %1070
  %1072 = vrot.lane.b32.xlu0 %v1028, 31
  %v1073 = vpop.permute.xlu0 %1072
  %1078 = vrot.lane.b32.xlu0 %v1058, 30
  %v1079 = vpop.permute.xlu0 %1078
  %1080 = vrot.lane.b32.xlu0 %v1059, 30
  %v1081 = vpop.permute.xlu0 %1080
  %1082 = vrot.lane.b32.xlu0 %v1060, 30
  %v1083 = vpop.permute.xlu0 %1082
  %1084 = vrot.lane.b32.xlu0 %v1061, 30
  %v1085 = vpop.permute.xlu0 %1084
  %v1086 = vld [vmem:[%s10] sm:$0xf]
  %1088 = vset.pattern.permute.xlu0 0
  %1089 = vperm.xlu0 %1088, %v1086
  %v1090 = vpop.permute.xlu0 %1089
  %1096 = vrot.lane.b32.xlu0 %v1054, 97
  %v1097 = vpop.permute.xlu0 %1096
  %1098 = vrot.lane.b32.xlu0 %v1055, 97
  %v1099 = vpop.permute.xlu0 %1098
  %1100 = vrot.lane.b32.xlu0 %v1056, 97
  %v1101 = vpop.permute.xlu0 %1100
  %1102 = vrot.lane.b32.xlu0 %v1057, 97
  %v1103 = vpop.permute.xlu0 %1102
  %1104 = vrot.lane.b32.xlu0 %v1067, 97
  %v1105 = vpop.permute.xlu0 %1104
  %1106 = vrot.lane.b32.xlu0 %v1069, 97
  %v1107 = vpop.permute.xlu0 %1106
  %1108 = vrot.lane.b32.xlu0 %v1071, 97
  %v1109 = vpop.permute.xlu0 %1108
  %1110 = vrot.lane.b32.xlu0 %v1073, 97
  %v1111 = vpop.permute.xlu0 %1110
  %1112 = vrot.lane.b32.xlu0 %v1079, 97
  %v1113 = vpop.permute.xlu0 %1112
  %1114 = vrot.lane.b32.xlu0 %v1081, 97
  %v1115 = vpop.permute.xlu0 %1114
  %1116 = vrot.lane.b32.xlu0 %v1083, 97
  %v1117 = vpop.permute.xlu0 %1116
  %1118 = vrot.lane.b32.xlu0 %v1085, 97
  %v1119 = vpop.permute.xlu0 %1118
  %v1133 = vsel %vm320, %v1029, 0
  %1135 = vmatprep.subr.mxu0 0.0
  %1136 = vmatpush1.msra.mxu0 %v1097
  %1137 = vmatprep.subr.mxu0 0.0
  %1138 = vmatpush1.msra.mxu0 %v1099
  %1139 = vmatprep.subr.mxu0 0.0
  %1140 = vmatpush1.msra.mxu0 %v1101
  %1141 = vmatprep.subr.mxu0 0.0
  %1142 = vmatpush1.msra.mxu0 %v1103
  %1143 = vmatprep.subr.mxu0 0.0
  %1144 = vmatpush1.msra.mxu0 %v1105
  %1145 = vmatprep.subr.mxu0 0.0
  %1146 = vmatpush1.msra.mxu0 %v1107
  %1147 = vmatprep.subr.mxu0 0.0
  %1148 = vmatpush1.msra.mxu0 %v1109
  %1149 = vmatprep.subr.mxu0 0.0
  %1150 = vmatpush1.msra.mxu0 %v1111
  %1151 = vmatprep.subr.mxu0 0.0
  %1152 = vmatpush1.msra.mxu0 %v1113
  %1153 = vmatprep.subr.mxu0 0.0
  %1154 = vmatpush1.msra.mxu0 %v1115
  %1155 = vmatprep.subr.mxu0 0.0
  %1156 = vmatpush1.msra.mxu0 %v1117
  %1157 = vmatprep.subr.mxu0 0.0
  %1158 = vmatpush1.msra.mxu0 %v1119
  %1159 = vmatprep.subr.mxu0 0.0
  %1160 = vmatpush1.msra.mxu0 0.0
  %1161 = vmatprep.subr.mxu0 0.0
  %1162 = vmatpush1.msra.mxu0 0.0
  %1163 = vmatprep.subr.mxu0 0.0
  %1164 = vmatpush1.msra.mxu0 0.0
  %1165 = vmatprep.subr.mxu0 0.0
  %1166 = vmatpush1.msra.mxu0 0.0
  %1167 = vmatprep.subr.mxu0 0.0
  %1168 = vmatpush1.msra.mxu0 0.0
  %1169 = vmatprep.subr.mxu0 0.0
  %1170 = vmatpush1.msra.mxu0 0.0
  %1171 = vmatprep.subr.mxu0 0.0
  %1172 = vmatpush1.msra.mxu0 0.0
  %1173 = vmatprep.subr.mxu0 0.0
  %1174 = vmatpush1.msra.mxu0 0.0
  %1175 = vmatprep.subr.mxu0 0.0
  %1176 = vmatpush1.msra.mxu0 0.0
  %1177 = vmatprep.subr.mxu0 0.0
  %1178 = vmatpush1.msra.mxu0 0.0
  %1179 = vmatprep.subr.mxu0 0.0
  %1180 = vmatpush1.msra.mxu0 0.0
  %1181 = vmatprep.subr.mxu0 0.0
  %1182 = vmatpush1.msra.mxu0 0.0
  %1183 = vmatprep.subr.mxu0 0.0
  %1184 = vmatpush1.msra.mxu0 0.0
  %1185 = vmatprep.subr.mxu0 0.0
  %1186 = vmatpush1.msra.mxu0 0.0
  %1187 = vmatprep.subr.mxu0 0.0
  %1188 = vmatpush1.msra.mxu0 0.0
  %1189 = vmatprep.subr.mxu0 0.0
  %1190 = vmatpush1.msra.mxu0 0.0
  %1191 = vmatprep.subr.mxu0 0.0
  %1192 = vmatpush1.msra.mxu0 0.0
  %1193 = vmatprep.subr.mxu0 0.0
  %1194 = vmatpush1.msra.mxu0 0.0
  %1195 = vmatprep.subr.mxu0 0.0
  %1196 = vmatpush1.msra.mxu0 0.0
  %1197 = vmatprep.subr.mxu0 0.0
  %1198 = vmatpush1.msra.mxu0 0.0
  %1199 = vmatprep.mubr.f32.mxu0 0.0
  %1200 = vmatmul.mubr.f32.gmra.mrb[0].mxu0 %v1133
  %v1201 = vpop.f32.mrb[0].mxu0
  %v1202 = vadd.f32 %v1090, %v1201
  %v1203 = vpop.f32.mrb[0].mxu0
  %1204 = vdwg.mxu0
  %vm1205 = vcmask 257024
  %1206 = vst.msk [vmem:[%s11] sm:$0xf] %vm1205, %v1202
  // Predicated region
  $region46: #{decoder_forward.1} parent=0 // pred_check
    _
  $region47: #{decoder_forward.1} parent=0 // pred_check_branch
    %1208 = sbr.rel (0) target = $region49
  $region48: #{decoder_forward.1} parent=0 // pred_region
    _
  $region49: #{decoder_forward.1} parent=0 // pred_fallthru
    _
  // Predicated region
  $region50: #{decoder_forward.1} parent=0 // pred_check
    _
  $region51: #{decoder_forward.1} parent=0 // pred_check_branch
    %1210 = sbr.rel (0) target = $region53
  $region52: #{decoder_forward.1} parent=0 // pred_region
    _
  $region53: #{decoder_forward.1} parent=0 // pred_fallthru
    _

</llo_original>
